<compile_context>
chip_gen: v7x
topology: tpu7x:2x2x1
jax: 0.10.0
libtpu: 0.0.40
codegen_flags: <defaults>
</compile_context>

<pallas_src>
import functools

import jax
import jax.numpy as jnp
from jax.experimental import pallas as pl
from jax.experimental.pallas import tpu as pltpu

_LANE = 128
_EPS = 1e-5                                  # torch F.layer_norm default eps
_TARGET_BUF_BYTES = 1 << 20                  # ~1 MiB per pipeline buffer
_ROW_BYTES_SIMPLE_MAX = 2 << 20              # above this, tile the normalized axis
_VMEM_LIMIT = 32 * 1024 * 1024               # safe on v5e/v6e (128 MiB) and v7x (64 MiB)


# ---------------------------------------------------------------------------
# Whole-row path: each grid step holds TB full rows in VMEM.
# ---------------------------------------------------------------------------
def _row_kernel(x_ref, o_ref, *, inv_n):
    """Two-pass stats (mean, then centered second moment) + fused normalize."""
    red = tuple(range(1, len(x_ref.shape)))
    x = x_ref[...]
    mean = jnp.sum(x, axis=red, keepdims=True, dtype=jnp.float32) * inv_n
    d = x.astype(jnp.float32) - mean            # tile is VMEM-resident: re-read is free
    var = jnp.sum(d * d, axis=red, keepdims=True) * inv_n
    o_ref[...] = (d * jax.lax.rsqrt(var + _EPS)).astype(o_ref.dtype)   # EUP rsqrt


def _layer_norm_rows(x, B, N, TB):
    """Batch-tiled, double-buffered; whole rows per block."""
    if N % _LANE == 0:
        x_in = x.reshape(B, N // _LANE, _LANE)          # free, contiguous reshape
        block = (TB, N // _LANE, _LANE)                 # last two dims: (full, 128)
        index_map = lambda i: (i, 0, 0)
    else:
        x_in = x.reshape(B, N)
        block = (TB, N)                                 # last dim == full N (exempt)
        index_map = lambda i: (i, 0)

    out = pl.pallas_call(
        functools.partial(_row_kernel, inv_n=1.0 / float(N)),
        out_shape=jax.ShapeDtypeStruct(x_in.shape, x.dtype),
        grid_spec=pltpu.PrefetchScalarGridSpec(
            num_scalar_prefetch=0,
            grid=(pl.cdiv(B, TB),),
            in_specs=[pl.BlockSpec(block, index_map)],
            out_specs=pl.BlockSpec(block, index_map),
        ),
        compiler_params=pltpu.CompilerParams(
            dimension_semantics=("parallel",),          # rows independent -> v7x 2-TC
            vmem_limit_bytes=_VMEM_LIMIT,
        ),
    )(x_in)
    return out.reshape(x.shape)


# ---------------------------------------------------------------------------
# Large-row fallback: tile the normalized axis; two-phase (stats, normalize).
# ---------------------------------------------------------------------------
def _stats_kernel(x_ref, mean_ref, rstd_ref, s1_ref, s2_ref, *, n, tn):
    k = pl.program_id(1)

    @pl.when(k == 0)
    def _init():
        s1_ref[...] = jnp.zeros_like(s1_ref)
        s2_ref[...] = jnp.zeros_like(s2_ref)

    x = x_ref[...].astype(jnp.float32)
    col = k * tn + jax.lax.broadcasted_iota(jnp.int32, x.shape, 1)
    x = jnp.where(col < n, x, 0.0)                      # mask tail of the last N-chunk
    s1_ref[...] += jnp.sum(x, axis=1, keepdims=True)
    s2_ref[...] += jnp.sum(x * x, axis=1, keepdims=True)

    @pl.when(k == pl.num_programs(1) - 1)
    def _finalize():
        inv_n = 1.0 / float(n)
        mean = s1_ref[...] * inv_n
        var = jnp.maximum(s2_ref[...] * inv_n - mean * mean, 0.0)   # clamp: no NaN
        mean_ref[...] = mean
        rstd_ref[...] = jax.lax.rsqrt(var + _EPS)


def _apply_kernel(x_ref, mean_ref, rstd_ref, o_ref):
    o_ref[...] = ((x_ref[...].astype(jnp.float32) - mean_ref[...])
                  * rstd_ref[...]).astype(o_ref.dtype)


def _layer_norm_big_rows(x, B, N, itemsize):
    x2 = x.reshape(B, N)
    TB = min(B, 8)                                      # full-B or multiple-of-8 sublanes
    TN = max(_LANE, (_TARGET_BUF_BYTES // max(TB * itemsize, 1)) // _LANE * _LANE)
    if TN >= N:
        TN = N                                          # full dim -> exempt block shape
    NT = pl.cdiv(N, TN)
    BT = pl.cdiv(B, TB)

    mean, rstd = pl.pallas_call(
        functools.partial(_stats_kernel, n=N, tn=TN),
        out_shape=(jax.ShapeDtypeStruct((B, 1), jnp.float32),
                   jax.ShapeDtypeStruct((B, 1), jnp.float32)),
        grid_spec=pltpu.PrefetchScalarGridSpec(
            num_scalar_prefetch=0,
            grid=(BT, NT),
            in_specs=[pl.BlockSpec((TB, TN), lambda i, k: (i, k))],
            out_specs=(pl.BlockSpec((TB, 1), lambda i, k: (i, 0)),
                       pl.BlockSpec((TB, 1), lambda i, k: (i, 0))),
            scratch_shapes=[pltpu.VMEM((TB, 1), jnp.float32),
                            pltpu.VMEM((TB, 1), jnp.float32)],
        ),
        compiler_params=pltpu.CompilerParams(
            dimension_semantics=("parallel", "arbitrary"),
            vmem_limit_bytes=_VMEM_LIMIT,
        ),
    )(x2)

    out = pl.pallas_call(
        _apply_kernel,
        out_shape=jax.ShapeDtypeStruct((B, N), x.dtype),
        grid_spec=pltpu.PrefetchScalarGridSpec(
            num_scalar_prefetch=0,
            grid=(BT, NT),
            in_specs=[pl.BlockSpec((TB, TN), lambda i, k: (i, k)),
                      pl.BlockSpec((TB, 1), lambda i, k: (i, 0)),
                      pl.BlockSpec((TB, 1), lambda i, k: (i, 0))],
            out_specs=pl.BlockSpec((TB, TN), lambda i, k: (i, k)),
        ),
        compiler_params=pltpu.CompilerParams(
            dimension_semantics=("parallel", "parallel"),
            vmem_limit_bytes=_VMEM_LIMIT,
        ),
    )(x2, mean, rstd)
    return out.reshape(x.shape)


# ---------------------------------------------------------------------------
# Public entry point: F.layer_norm(x, x.shape[1:]) (no affine).
# ---------------------------------------------------------------------------
def layer_norm(x):
    B = x.shape[0]
    N = 1
    for d in x.shape[1:]:
        N *= int(d)
    if B == 0 or N == 0:
        return x

    itemsize = jnp.dtype(x.dtype).itemsize
    row_bytes = N * itemsize
    aligned = (N % _LANE == 0)

    if aligned and row_bytes <= _ROW_BYTES_SIMPLE_MAX:
        # ~1 MiB buffers and >= 2 grid steps when B permits (pipelining + v7x 2-TC).
        TB = max(1, min(B, _TARGET_BUF_BYTES // max(row_bytes, 1)))
        TB = min(TB, max(1, B // min(B, 8)))
        return _layer_norm_rows(x, B, N, TB)

    if not aligned:
        # 2-D (TB, N) blocks put TB on the sublane axis: keep it full-B or a
        # multiple of 8 so the block shape is legal without any padding.
        if B * row_bytes <= 4 * _TARGET_BUF_BYTES:
            return _layer_norm_rows(x, B, N, B)
        if B >= 16 and 8 * row_bytes <= _ROW_BYTES_SIMPLE_MAX:
            return _layer_norm_rows(x, B, N, 8)

    return _layer_norm_big_rows(x, B, N, itemsize)


if __name__ == "__main__":
    root = jax.random.PRNGKey(0)
    k0, k1, k2 = jax.random.split(root, 3)

    def ref_layer_norm(a):
        af = a.reshape(a.shape[0], -1).astype(jnp.float32)
        mu = jnp.mean(af, axis=-1, keepdims=True)
        var = jnp.mean((af - mu) ** 2, axis=-1, keepdims=True)
        return ((af - mu) * jax.lax.rsqrt(var + _EPS)).reshape(a.shape).astype(a.dtype)

    # 1) main path: small NCHW input (N = 1024, lane-aligned), batch-tiled grid.
    x = jax.random.normal(k0, (2, 4, 16, 16), dtype=jnp.float32)
    y = jax.block_until_ready(layer_norm(x))
    assert y.shape == x.shape and y.dtype == x.dtype
    assert float(jnp.max(jnp.abs(y - ref_layer_norm(x)))) < 1e-4

    # 2) unaligned normalized size (N = 105, not a multiple of 128): no pad/slice.
    xu = jax.random.normal(k1, (2, 3, 5, 7), dtype=jnp.float32)
    yu = jax.block_until_ready(layer_norm(xu))
    assert float(jnp.max(jnp.abs(yu - ref_layer_norm(xu)))) < 1e-4

    # 3) large-row fallback (N-tiled, two-phase) exercised directly.
    xb = jax.random.normal(k2, (2, 132000), dtype=jnp.float32)
    yb = jax.block_until_ready(
        _layer_norm_big_rows(xb, 2, 132000, jnp.dtype(xb.dtype).itemsize))
    assert float(jnp.max(jnp.abs(yb - ref_layer_norm(xb)))) < 2e-3

    print("KERNEL_OK")
</pallas_src>

<mosaic_0001>
module attributes {stable_mosaic.version = 11 : i64} {
  func.func @_row_kernel(%arg0: i32, %arg1: memref<1x8x128xf32, #tpu.memory_space<vmem>>, %arg2: memref<1x8x128xf32, #tpu.memory_space<vmem>>) attributes {dimension_semantics = [#tpu.dimension_semantics<parallel>], iteration_bounds = array<i64: 2>, scalar_prefetch = 0 : i64, scratch_operands = 0 : i64, tpu.core_type = #tpu.core_type<tc>, window_params = [{transform_indices = @transform_0, window_bounds = array<i64: 1, 8, 128>}, {transform_indices = @transform_1, window_bounds = array<i64: 1, 8, 128>}]} {
    %c0 = arith.constant 0 : index
    %c0_0 = arith.constant 0 : index
    %c0_1 = arith.constant 0 : index
    %0 = vector.load %arg1[%c0, %c0_0, %c0_1] : memref<1x8x128xf32, #tpu.memory_space<vmem>>, vector<1x8x128xf32>
    %cst = arith.constant dense<0.000000e+00> : vector<1xf32>
    %1 = vector.multi_reduction <add>, %0, %cst [1, 2] : vector<1x8x128xf32> to vector<1xf32>
    %2 = vector.shape_cast %1 : vector<1xf32> to vector<1x1x1xf32>
    %cst_2 = arith.constant 9.765625E-4 : f32
    %3 = vector.broadcast %cst_2 : f32 to vector<1x1x1xf32>
    %4 = arith.mulf %2, %3 : vector<1x1x1xf32>
    %5 = vector.broadcast %4 : vector<1x1x1xf32> to vector<1x8x128xf32>
    %6 = arith.subf %0, %5 : vector<1x8x128xf32>
    %7 = arith.mulf %6, %6 : vector<1x8x128xf32>
    %cst_3 = arith.constant dense<0.000000e+00> : vector<1xf32>
    %8 = vector.multi_reduction <add>, %7, %cst_3 [1, 2] : vector<1x8x128xf32> to vector<1xf32>
    %9 = vector.shape_cast %8 : vector<1xf32> to vector<1x1x1xf32>
    %cst_4 = arith.constant 9.765625E-4 : f32
    %10 = vector.broadcast %cst_4 : f32 to vector<1x1x1xf32>
    %11 = arith.mulf %9, %10 : vector<1x1x1xf32>
    %cst_5 = arith.constant 9.99999974E-6 : f32
    %12 = vector.broadcast %cst_5 : f32 to vector<1x1x1xf32>
    %13 = arith.addf %11, %12 : vector<1x1x1xf32>
    %14 = math.rsqrt %13 : vector<1x1x1xf32>
    %15 = vector.broadcast %14 : vector<1x1x1xf32> to vector<1x8x128xf32>
    %16 = arith.mulf %6, %15 : vector<1x8x128xf32>
    %c0_6 = arith.constant 0 : index
    %c0_7 = arith.constant 0 : index
    %c0_8 = arith.constant 0 : index
    %17 = vector.load %arg2[%c0_6, %c0_7, %c0_8] : memref<1x8x128xf32, #tpu.memory_space<vmem>>, vector<1x8x128xf32>
    tpu.vector_store %arg2[%c0_6, %c0_7, %c0_8], %16 {strides = array<i32>} : memref<1x8x128xf32, #tpu.memory_space<vmem>>, vector<1x8x128xf32>,
    return
  }
  func.func @transform_0(%arg0: i32) -> (i32, i32, i32) {
    %c0_i32 = arith.constant 0 : i32
    %c0_i32_0 = arith.constant 0 : i32
    %c0_i32_1 = arith.constant 0 : i32
    return %arg0, %c0_i32, %c0_i32_0 : i32, i32, i32
  }
  func.func @transform_1(%arg0: i32) -> (i32, i32, i32) {
    %c0_i32 = arith.constant 0 : i32
    %c0_i32_0 = arith.constant 0 : i32
    %c0_i32_1 = arith.constant 0 : i32
    return %arg0, %c0_i32, %c0_i32_0 : i32, i32, i32
  }
}

</mosaic_0001>

<llo_original>
// kernel: tpu_custom_call.1
$region0: #{tpu_custom_call.1}
  #allocation0 [shape = 'u32[]', space=smem, size = 0x4, offset = 0x4, fixed_abs, tag = 'smem constant byte address 0x4 - core index']
  #allocation1 [shape = 'u32[144,128]{1,0:T(1,128)}', space=vmem, size = 0x12000, scoped, tag = 'internal scratch']
  %s0 = inlined_call_operand.hbm [shape: f32[2,8,128], index: 0, kind: input, shape index: {}]
  %s1 = inlined_call_operand.hbm [shape: f32[2,8,128], index: 1, kind: output, shape index: {}]
  %s2 = sld [smem:[#allocation0]]
  $region41: #{tpu_custom_call.1} parent=0
    _
  %s4 = ssub.s32 1, %s2
  %s5 = scalar_select 0, %s4, %s2
  $region1: #{tpu_custom_call.1} parent=0
    #allocation2 [shape = 'u8[8192]{0}', space=vmem, size = 0x2000, scoped, tag = 'input window, operand 0']
    #allocation3 [shape = 's32[2]{0}', space=sflag, size = 0x8, scoped, tag = 'scoped memory for tpu_custom_call.1']
    #allocation4 [shape = 's32[2]{0}', space=sflag, size = 0x8, scoped, tag = 'scoped memory for tpu_custom_call.1']
    #allocation5 [shape = 'u8[8192]{0}', space=vmem, size = 0x2000, scoped, tag = 'output window, operand 0']
    %6 = vsyncpa [#allocation3], 0
    %s7 = scalar_lea.sflag [#allocation3], 1
    %8 = vsyncpa %s7, 0
    %9 = vsyncpa [#allocation4], 0
    %s10 = scalar_lea.sflag [#allocation4], 1
    %11 = vsyncpa %s10, 0
    loop: start=0, step=1, limit=4
    $region2: #{tpu_custom_call.1} parent=1 // loop_pre_header
      _
    $region3: #{tpu_custom_call.1} parent=1 // loop_header
      %s13 = sphi 0, %s17
      %p14 = scmp.ge.s32.totalorder %s13, 4
      %s23 = sphi 0, %s25
      %s26 = sphi 0, %s23
      %s27 = sphi 0, %s26
      %s43 = sphi 0, %s27
      %s49 = sphi 0, %s51
      %s52 = sphi 0, %s49
      %s53 = sphi 0, %s52
      %s69 = sphi 0, %s53
    $region4: #{tpu_custom_call.1} parent=1 // loop_header_branch
      %16 = sbr.rel (%p14) target = $region8
    $region5: #{tpu_custom_call.1} parent=1 // loop_body
      %s18 = ssub.s32 %s13, 1
      %s19 = ssub.s32 %s13, 2
      %s20 = sadd.s32 %s13, 1
      %s21 = ssub.s32 %s13, %s20
      %p22 = scmp.eq.s32.totalorder %s21, 0
      %s24 = sadd.s32 %s23, 1
      %s25 = scalar_select %p22, %s23, %s24
      %p28 = pneg %p22
      %p29 = scmp.eq.s32.totalorder %s13, 1
      %p30 = por %p28, %p29
      %p31 = scmp.ne.s32.totalorder %s23, %s26
      %p32 = scmp.eq.s32.totalorder %s13, 0
      %p33 = por %p31, %p32
      %p34 = scmp.ne.s32.totalorder %s23, %s26
      %p35 = scmp.eq.s32.totalorder %s18, 1
      %p36 = por %p34, %p35
      %p37 = scmp.ne.s32.totalorder %s26, %s27
      %p38 = scmp.eq.s32.totalorder %s18, 0
      %p39 = por %p37, %p38
      %p40 = scmp.ne.s32.totalorder %s26, %s27
      %p41 = scmp.eq.s32.totalorder %s19, 1
      %p42 = por %p40, %p41
      %p44 = scmp.ne.s32.totalorder %s27, %s43
      %p45 = scmp.eq.s32.totalorder %s19, 0
      %p46 = por %p44, %p45
      %s47 = ssub.s32 %s13, %s20
      %p48 = scmp.eq.s32.totalorder %s47, 0
      %s50 = sadd.s32 %s49, 1
      %s51 = scalar_select %p48, %s49, %s50
      %p54 = pneg %p48
      %p55 = scmp.eq.s32.totalorder %s13, 1
      %p56 = por %p54, %p55
      %p57 = scmp.ne.s32.totalorder %s49, %s52
      %p58 = scmp.eq.s32.totalorder %s13, 0
      %p59 = por %p57, %p58
      %p60 = scmp.ne.s32.totalorder %s49, %s52
      %p61 = scmp.eq.s32.totalorder %s18, 1
      %p62 = por %p60, %p61
      %p63 = scmp.ne.s32.totalorder %s52, %s53
      %p64 = scmp.eq.s32.totalorder %s18, 0
      %p65 = por %p63, %p64
      %p66 = scmp.ne.s32.totalorder %s52, %s53
      %p67 = scmp.eq.s32.totalorder %s19, 1
      %p68 = por %p66, %p67
      %p70 = scmp.ne.s32.totalorder %s53, %s69
      %p71 = scmp.eq.s32.totalorder %s19, 0
      %p72 = por %p70, %p71
      %p73 = scmp.le.s32.totalorder 1, %s13
      %p74 = scmp.lt.s32.totalorder %s13, 3
      %p75 = pnand %p73, %p74
      %p76 = pneg %p75
      // Predicated region
      $region9: #{tpu_custom_call.1} parent=5 // pred_check
        _
      $region10: #{tpu_custom_call.1} parent=5 // pred_check_branch
        %78 = sbr.rel (%p75) target = $region12
      $region11: #{tpu_custom_call.1} parent=5 // pred_region
        %s79 = ssub.s32 %s13, 1
      $region12: #{tpu_custom_call.1} parent=5 // pred_fallthru
        _
      %p80 = scmp.lt.s32.totalorder %s13, 2
      // Predicated region
      $region13: #{tpu_custom_call.1} parent=5 // pred_check
        %p81 = pneg %p80
      $region14: #{tpu_custom_call.1} parent=5 // pred_check_branch
        %83 = sbr.rel (%p81) target = $region16
      $region15: #{tpu_custom_call.1} parent=5 // pred_region
        // Predicated region
        $region17: #{tpu_custom_call.1} parent=15 // pred_check
          %p84 = pneg %p33
        $region18: #{tpu_custom_call.1} parent=15 // pred_check_branch
          %86 = sbr.rel (%p84) target = $region20
        $region19: #{tpu_custom_call.1} parent=15 // pred_region
          %s87 = sand.u32 %s23, 1
          %s88 = scalar_lea.sflag [#allocation3], %s87
          %s89 = sand.u32 %s23, 1
          %s90 = smul.addr %s89, 8
          %s91 = scalar_lea.vmem [#allocation2], %s90
          %s93 = ssub.s32 128, 128
          %94 = vsyncadd %s88, %s93
          %s95 = smul.addr %s13, 128
          %s96 = scalar_lea.hbm %s0, %s95
          %s98 = sshll.u32 %s91, 4
          %s99 = int_to_ptr.vmem [resolvable:$true] %s98
          %101 = dma.hbm_to_vmem [thread:$0]  %s96, 128, %s99, %s88
        $region20: #{tpu_custom_call.1} parent=15 // pred_fallthru
          _
      $region16: #{tpu_custom_call.1} parent=5 // pred_fallthru
        _
      %p102 = scmp.le.s32.totalorder 1, %s13
      %p103 = scmp.lt.s32.totalorder %s13, 3
      %p104 = pnand %p102, %p103
      %p105 = pneg %p104
      // Predicated region
      $region21: #{tpu_custom_call.1} parent=5 // pred_check
        _
      $region22: #{tpu_custom_call.1} parent=5 // pred_check_branch
        %107 = sbr.rel (%p104) target = $region24
      $region23: #{tpu_custom_call.1} parent=5 // pred_region
        %s108 = ssub.s32 %s13, 1
        %s109 = sand.u32 %s26, 1
        %s110 = scalar_lea.sflag [#allocation3], %s109
        %s111 = sand.u32 %s26, 1
        %s112 = smul.addr %s111, 8
        %s113 = scalar_lea.vmem [#allocation2], %s112
        // Predicated region
        $region25: #{tpu_custom_call.1} parent=23 // pred_check
          %p114 = pneg %p39
        $region26: #{tpu_custom_call.1} parent=23 // pred_check_branch
          %116 = sbr.rel (%p114) target = $region28
        $region27: #{tpu_custom_call.1} parent=23 // pred_region
          %117 = dma.done %s110, 128
        $region28: #{tpu_custom_call.1} parent=23 // pred_fallthru
          _
        %s118 = sand.u32 %s26, 1
        %s119 = scalar_lea.sflag [#allocation3], %s118
        %s120 = sand.u32 %s26, 1
        %s121 = smul.addr %s120, 8
        %s122 = scalar_lea.vmem [#allocation2], %s121
        %p123 = pneg %p39
        %p124 = pneg %p36
        %p125 = pneg %p65
        %p126 = pneg %p62
        %s127 = sand.u32 %s52, 1
        %s128 = scalar_lea.sflag [#allocation4], %s127
        %s129 = sand.u32 %s52, 1
        %s130 = smul.addr %s129, 8
        %s131 = scalar_lea.vmem [#allocation5], %s130
        %v132 = vld [vmem:[%s113] sm:$0xff]
        %133 = vadd.xlane.f32.xlu0 %v132
        %v134 = vpop.xlane.xlu0 %133
        %v135 = vrot.slane %v134, 4
        %v136 = vadd.f32 %v134, %v135
        %v137 = vrot.slane %v136, 2
        %v138 = vadd.f32 %v136, %v137
        %v139 = vrot.slane %v138, 1
        %v140 = vadd.f32 %v138, %v139
        %v141 = vmul.f32 %v140, 0.0009765625
        %v142 = vsub.f32 %v132, %v141
        %v143 = vmul.f32 %v142, %v142
        %144 = vadd.xlane.f32.xlu0 %v143
        %v145 = vpop.xlane.xlu0 %144
        %v146 = vrot.slane %v145, 4
        %v147 = vadd.f32 %v145, %v146
        %v148 = vrot.slane %v147, 2
        %v149 = vadd.f32 %v147, %v148
        %v150 = vrot.slane %v149, 1
        %v151 = vadd.f32 %v149, %v150
        %v152 = vmul.f32 %v151, 0.0009765625
        %v153 = vadd.f32 %v152, 1e-05
        %v154 = vrsqrt.pop %v153
        %v155 = vmul.f32 %v142, %v154
        %156 = vst [vmem:[%s131] sm:$0xff] %v155
        %s157 = sand.u32 %s52, 1
        %s158 = scalar_lea.sflag [#allocation4], %s157
        %s159 = sand.u32 %s52, 1
        %s160 = smul.addr %s159, 8
        %s161 = scalar_lea.vmem [#allocation5], %s160
        // Predicated region
        $region29: #{tpu_custom_call.1} parent=23 // pred_check
          %p162 = pneg %p62
        $region30: #{tpu_custom_call.1} parent=23 // pred_check_branch
          %164 = sbr.rel (%p162) target = $region32
        $region31: #{tpu_custom_call.1} parent=23 // pred_region
          %s166 = ssub.s32 128, 128
          %167 = vsyncadd %s158, %s166
          %s168 = smul.addr %s18, 128
          %s169 = scalar_lea.hbm %s1, %s168
          %s171 = sshll.u32 %s161, 4
          %s172 = int_to_ptr.vmem [resolvable:$true] %s171
          %174 = dma.vmem_to_hbm [thread:$0]  %s172, 128, %s169, %s158
        $region32: #{tpu_custom_call.1} parent=23 // pred_fallthru
          _
      $region24: #{tpu_custom_call.1} parent=5 // pred_fallthru
        _
      %p175 = scmp.le.s32.totalorder 2, %s13
      // Predicated region
      $region33: #{tpu_custom_call.1} parent=5 // pred_check
        %p176 = pneg %p175
      $region34: #{tpu_custom_call.1} parent=5 // pred_check_branch
        %178 = sbr.rel (%p176) target = $region36
      $region35: #{tpu_custom_call.1} parent=5 // pred_region
        %s179 = ssub.s32 %s13, 2
        // Predicated region
        $region37: #{tpu_custom_call.1} parent=35 // pred_check
          %p180 = pneg %p68
        $region38: #{tpu_custom_call.1} parent=35 // pred_check_branch
          %182 = sbr.rel (%p180) target = $region40
        $region39: #{tpu_custom_call.1} parent=35 // pred_region
          %s183 = sand.u32 %s53, 1
          %s184 = scalar_lea.sflag [#allocation4], %s183
          %s185 = sand.u32 %s53, 1
          %s186 = smul.addr %s185, 8
          %s187 = scalar_lea.vmem [#allocation5], %s186
          %188 = dma.done %s184, 128
        $region40: #{tpu_custom_call.1} parent=35 // pred_fallthru
          _
      $region36: #{tpu_custom_call.1} parent=5 // pred_fallthru
        _
    $region6: #{tpu_custom_call.1} parent=1 // loop_footer
      %s17 = sadd.s32 1, %s13
    $region7: #{tpu_custom_call.1} parent=1 // loop_footer_branch
      %12 = sbr.rel target = $region3
    $region8: #{tpu_custom_call.1} parent=1 // loop_exit
      _
    %189 = vsyncpa [#allocation3], 1
    %s190 = scalar_lea.sflag [#allocation3], 1
    %191 = vsyncpa %s190, 1
    %192 = vsyncpa [#allocation4], 1
    %s193 = scalar_lea.sflag [#allocation4], 1
    %194 = vsyncpa %s193, 1

</llo_original>
